<compile_context>
chip_gen: v7x
topology: tpu7x:2x2x1
jax: 0.10.0
libtpu: 0.0.40
codegen_flags: <defaults>
</compile_context>

<pallas_src>
import math

import jax
import jax.numpy as jnp
from jax.experimental import pallas as pl
from jax.experimental.pallas import tpu as pltpu


def _round_up(n, m):
    return ((n + m - 1) // m) * m


def mlp_kernel(p_ref, x_ref, o_ref):
    """One batch tile of Linear(2,10) -> ReLU -> Linear(10,2).

    p_ref : SMEM f32[52] = [w1 (10,2) row-major | b1 (10) | w2 (2,10) row-major | b2 (2)]
            p[2j]=w1[j,0], p[2j+1]=w1[j,1], p[20+j]=b1[j],
            p[30+j]=w2[0,j], p[40+j]=w2[1,j], p[50]=b2[0], p[51]=b2[1]
    x_ref : VMEM f32[rows, 128], feature-interleaved: lane 2k -> x[b,0], lane 2k+1 -> x[b,1]
    o_ref : VMEM f32[rows, 128], same interleaving for the two output features.
    """
    xv = x_ref[...]                                           # (rows, 128)
    lane = jax.lax.broadcasted_iota(jnp.int32, xv.shape, 1)
    is_even = (lane & 1) == 0
    # De-interleave: every lane holds (feature0, feature1) of its own batch
    # element.  roll is an XLU op (free slot); wrapped-around lane values are
    # never selected by the parity mask.
    x0 = jnp.where(is_even, xv, pltpu.roll(xv, 1, axis=1))    # feature 0 everywhere
    x1 = jnp.where(is_even, pltpu.roll(xv, 127, axis=1), xv)  # feature 1 everywhere
    # Second-layer bias, chosen by output-feature parity of each lane.
    acc = jnp.where(is_even, p_ref[50], p_ref[51])
    for j in range(10):                                       # unrolled at trace time
        h = jnp.maximum(p_ref[2 * j] * x0 + p_ref[2 * j + 1] * x1 + p_ref[20 + j], 0.0)
        acc = acc + jnp.where(is_even, p_ref[30 + j], p_ref[40 + j]) * h
    o_ref[...] = acc


def simple_cnn_forward(x, w1, b1, w2, b2, *, max_tile_b=65536):
    """Pallas implementation of SimpleCNN.forward.

    x  : (B, 2)  float32
    w1 : (10, 2) float32 (Fc1.weight, PyTorch layout), b1 : (10,)
    w2 : (2, 10) float32 (Fc2.weight),                 b2 : (2,)
    returns (B, 2) float32
    """
    B, f_in = x.shape
    assert f_in == 2
    # rows-per-tile must be a multiple of 8 (sublane tiling) -> tile_b % 512 == 0.
    granule = 512
    max_tile_b = max(granule, (max_tile_b // granule) * granule)
    n_tiles = pl.cdiv(B, max_tile_b)
    tile_b = _round_up(pl.cdiv(B, n_tiles), granule)   # sized to B => <granule padded waste
    b_pad = n_tiles * tile_b

    x = x.astype(jnp.float32)
    if b_pad != B:
        x = jnp.pad(x, ((0, b_pad - B), (0, 0)))
    x_il = x.reshape(b_pad // 64, 128)                 # free reshape of row-major (b_pad, 2)

    params = jnp.concatenate([
        w1.astype(jnp.float32).reshape(-1),
        b1.astype(jnp.float32).reshape(-1),
        w2.astype(jnp.float32).reshape(-1),
        b2.astype(jnp.float32).reshape(-1),
    ])                                                 # f32[52]

    rows_per_tile = tile_b // 64
    cost = pl.CostEstimate(
        flops=2 * 2 * b_pad * (2 * 10 + 10 * 2),       # pair-duplicated FMAs
        transcendentals=0,
        bytes_accessed=2 * b_pad * 2 * 4 + params.size * 4,
    )

    out_il = pl.pallas_call(
        mlp_kernel,
        out_shape=jax.ShapeDtypeStruct((b_pad // 64, 128), jnp.float32),
        grid=(n_tiles,),
        in_specs=[
            pl.BlockSpec(memory_space=pltpu.MemorySpace.SMEM),     # params: 52 scalars
            pl.BlockSpec((rows_per_tile, 128), lambda i: (i, 0)),  # x tile (pipelined)
        ],
        out_specs=pl.BlockSpec((rows_per_tile, 128), lambda i: (i, 0)),
        compiler_params=pltpu.CompilerParams(
            # On v7x, (pltpu.CORE_PARALLEL,) here shards the batch grid over both TCs.
            dimension_semantics=("parallel",),
            vmem_limit_bytes=32 * 1024 * 1024,
        ),
        cost_estimate=cost,
    )(params, x_il)

    out = out_il.reshape(b_pad, 2)                     # free reshape back to row-major
    return out if b_pad == B else out[:B]


def init_params(key):
    """nn.Linear-style U[-1/sqrt(fan_in), +1/sqrt(fan_in)] init, PyTorch layout."""
    k1, k2, k3, k4 = jax.random.split(key, 4)
    bound1 = 1.0 / math.sqrt(2.0)    # Fc1 fan_in = 2
    bound2 = 1.0 / math.sqrt(10.0)   # Fc2 fan_in = 10
    w1 = jax.random.uniform(k1, (10, 2), jnp.float32, -bound1, bound1)
    b1 = jax.random.uniform(k2, (10,), jnp.float32, -bound1, bound1)
    w2 = jax.random.uniform(k3, (2, 10), jnp.float32, -bound2, bound2)
    b2 = jax.random.uniform(k4, (2,), jnp.float32, -bound2, bound2)
    return w1, b1, w2, b2


def reference_forward(x, w1, b1, w2, b2):
    h = jnp.maximum(x @ w1.T + b1, 0.0)
    return h @ w2.T + b2


if __name__ == "__main__":
    key = jax.random.PRNGKey(0)
    kx, kp = jax.random.split(key)
    w1, b1, w2, b2 = init_params(kp)

    # Small-batch check (single tile, tail padding sliced off).
    B = 8
    x = jax.random.normal(kx, (B, 2), jnp.float32)
    out = jax.block_until_ready(simple_cnn_forward(x, w1, b1, w2, b2))
    ref = reference_forward(x, w1, b1, w2, b2)
    assert out.shape == (B, 2)
    assert jnp.allclose(out, ref, atol=1e-5, rtol=1e-5)

    # Multi-tile / ragged-batch check: adaptive tile sizing + 3-step grid.
    B2 = 2348
    x2 = jax.random.normal(kx, (B2, 2), jnp.float32)
    out2 = jax.block_until_ready(
        simple_cnn_forward(x2, w1, b1, w2, b2, max_tile_b=1024))
    ref2 = reference_forward(x2, w1, b1, w2, b2)
    assert out2.shape == (B2, 2)
    assert jnp.allclose(out2, ref2, atol=1e-5, rtol=1e-5)

    print("KERNEL_OK")
</pallas_src>

<mosaic_0001>
module attributes {stable_mosaic.version = 11 : i64} {
  func.func @mlp_kernel(%arg0: i32, %arg1: memref<52xf32, #tpu.memory_space<smem>>, %arg2: memref<8x128xf32, #tpu.memory_space<vmem>>, %arg3: memref<8x128xf32, #tpu.memory_space<vmem>>) attributes {dimension_semantics = [#tpu.dimension_semantics<parallel>], iteration_bounds = array<i64: 1>, scalar_prefetch = 0 : i64, scratch_operands = 0 : i64, tpu.core_type = #tpu.core_type<tc>, window_params = [{transform_indices = @transform_0, window_bounds = array<i64: 52>}, {transform_indices = @transform_1, window_bounds = array<i64: 8, 128>}, {transform_indices = @transform_2, window_bounds = array<i64: 8, 128>}]} {
    %c0 = arith.constant 0 : index
    %c0_0 = arith.constant 0 : index
    %0 = vector.load %arg2[%c0, %c0_0] : memref<8x128xf32, #tpu.memory_space<vmem>>, vector<8x128xf32>
    %1 = tpu.iota {dimensions = array<i32: 1>} : vector<8x128xi32>
    %c1_i32 = arith.constant 1 : i32
    %2 = vector.broadcast %c1_i32 : i32 to vector<8x128xi32>
    %3 = arith.andi %1, %2 : vector<8x128xi32>
    %c0_i32 = arith.constant 0 : i32
    %4 = vector.broadcast %c0_i32 : i32 to vector<8x128xi32>
    %5 = arith.cmpi eq, %3, %4 : vector<8x128xi32>
    %c1_i32_1 = arith.constant 1 : i32
    %6 = tpu.dynamic_rotate %0 by %c1_i32_1 dim 1 : vector<8x128xf32>, i32 -> vector<8x128xf32>
    %7 = arith.select %5, %0, %6 : vector<8x128xi1>, vector<8x128xf32>
    %c127_i32 = arith.constant 127 : i32
    %8 = tpu.dynamic_rotate %0 by %c127_i32 dim 1 : vector<8x128xf32>, i32 -> vector<8x128xf32>
    %9 = arith.select %5, %8, %0 : vector<8x128xi1>, vector<8x128xf32>
    %c50 = arith.constant 50 : index
    %10 = memref.load %arg1[%c50] : memref<52xf32, #tpu.memory_space<smem>>
    %c51 = arith.constant 51 : index
    %11 = memref.load %arg1[%c51] : memref<52xf32, #tpu.memory_space<smem>>
    %12 = vector.broadcast %10 : f32 to vector<8x128xf32>
    %13 = vector.broadcast %11 : f32 to vector<8x128xf32>
    %14 = arith.select %5, %12, %13 : vector<8x128xi1>, vector<8x128xf32>
    %c0_2 = arith.constant 0 : index
    %15 = memref.load %arg1[%c0_2] : memref<52xf32, #tpu.memory_space<smem>>
    %16 = vector.broadcast %15 : f32 to vector<8x128xf32>
    %17 = arith.mulf %16, %7 : vector<8x128xf32>
    %c1 = arith.constant 1 : index
    %18 = memref.load %arg1[%c1] : memref<52xf32, #tpu.memory_space<smem>>
    %19 = vector.broadcast %18 : f32 to vector<8x128xf32>
    %20 = arith.mulf %19, %9 : vector<8x128xf32>
    %21 = arith.addf %17, %20 : vector<8x128xf32>
    %c20 = arith.constant 20 : index
    %22 = memref.load %arg1[%c20] : memref<52xf32, #tpu.memory_space<smem>>
    %23 = vector.broadcast %22 : f32 to vector<8x128xf32>
    %24 = arith.addf %21, %23 : vector<8x128xf32>
    %cst = arith.constant 0.000000e+00 : f32
    %25 = vector.broadcast %cst : f32 to vector<8x128xf32>
    %26 = arith.maximumf %24, %25 : vector<8x128xf32>
    %c30 = arith.constant 30 : index
    %27 = memref.load %arg1[%c30] : memref<52xf32, #tpu.memory_space<smem>>
    %c40 = arith.constant 40 : index
    %28 = memref.load %arg1[%c40] : memref<52xf32, #tpu.memory_space<smem>>
    %29 = vector.broadcast %27 : f32 to vector<8x128xf32>
    %30 = vector.broadcast %28 : f32 to vector<8x128xf32>
    %31 = arith.select %5, %29, %30 : vector<8x128xi1>, vector<8x128xf32>
    %32 = arith.mulf %31, %26 : vector<8x128xf32>
    %33 = arith.addf %14, %32 : vector<8x128xf32>
    %c2 = arith.constant 2 : index
    %34 = memref.load %arg1[%c2] : memref<52xf32, #tpu.memory_space<smem>>
    %35 = vector.broadcast %34 : f32 to vector<8x128xf32>
    %36 = arith.mulf %35, %7 : vector<8x128xf32>
    %c3 = arith.constant 3 : index
    %37 = memref.load %arg1[%c3] : memref<52xf32, #tpu.memory_space<smem>>
    %38 = vector.broadcast %37 : f32 to vector<8x128xf32>
    %39 = arith.mulf %38, %9 : vector<8x128xf32>
    %40 = arith.addf %36, %39 : vector<8x128xf32>
    %c21 = arith.constant 21 : index
    %41 = memref.load %arg1[%c21] : memref<52xf32, #tpu.memory_space<smem>>
    %42 = vector.broadcast %41 : f32 to vector<8x128xf32>
    %43 = arith.addf %40, %42 : vector<8x128xf32>
    %cst_3 = arith.constant 0.000000e+00 : f32
    %44 = vector.broadcast %cst_3 : f32 to vector<8x128xf32>
    %45 = arith.maximumf %43, %44 : vector<8x128xf32>
    %c31 = arith.constant 31 : index
    %46 = memref.load %arg1[%c31] : memref<52xf32, #tpu.memory_space<smem>>
    %c41 = arith.constant 41 : index
    %47 = memref.load %arg1[%c41] : memref<52xf32, #tpu.memory_space<smem>>
    %48 = vector.broadcast %46 : f32 to vector<8x128xf32>
    %49 = vector.broadcast %47 : f32 to vector<8x128xf32>
    %50 = arith.select %5, %48, %49 : vector<8x128xi1>, vector<8x128xf32>
    %51 = arith.mulf %50, %45 : vector<8x128xf32>
    %52 = arith.addf %33, %51 : vector<8x128xf32>
    %c4 = arith.constant 4 : index
    %53 = memref.load %arg1[%c4] : memref<52xf32, #tpu.memory_space<smem>>
    %54 = vector.broadcast %53 : f32 to vector<8x128xf32>
    %55 = arith.mulf %54, %7 : vector<8x128xf32>
    %c5 = arith.constant 5 : index
    %56 = memref.load %arg1[%c5] : memref<52xf32, #tpu.memory_space<smem>>
    %57 = vector.broadcast %56 : f32 to vector<8x128xf32>
    %58 = arith.mulf %57, %9 : vector<8x128xf32>
    %59 = arith.addf %55, %58 : vector<8x128xf32>
    %c22 = arith.constant 22 : index
    %60 = memref.load %arg1[%c22] : memref<52xf32, #tpu.memory_space<smem>>
    %61 = vector.broadcast %60 : f32 to vector<8x128xf32>
    %62 = arith.addf %59, %61 : vector<8x128xf32>
    %cst_4 = arith.constant 0.000000e+00 : f32
    %63 = vector.broadcast %cst_4 : f32 to vector<8x128xf32>
    %64 = arith.maximumf %62, %63 : vector<8x128xf32>
    %c32 = arith.constant 32 : index
    %65 = memref.load %arg1[%c32] : memref<52xf32, #tpu.memory_space<smem>>
    %c42 = arith.constant 42 : index
    %66 = memref.load %arg1[%c42] : memref<52xf32, #tpu.memory_space<smem>>
    %67 = vector.broadcast %65 : f32 to vector<8x128xf32>
    %68 = vector.broadcast %66 : f32 to vector<8x128xf32>
    %69 = arith.select %5, %67, %68 : vector<8x128xi1>, vector<8x128xf32>
    %70 = arith.mulf %69, %64 : vector<8x128xf32>
    %71 = arith.addf %52, %70 : vector<8x128xf32>
    %c6 = arith.constant 6 : index
    %72 = memref.load %arg1[%c6] : memref<52xf32, #tpu.memory_space<smem>>
    %73 = vector.broadcast %72 : f32 to vector<8x128xf32>
    %74 = arith.mulf %73, %7 : vector<8x128xf32>
    %c7 = arith.constant 7 : index
    %75 = memref.load %arg1[%c7] : memref<52xf32, #tpu.memory_space<smem>>
    %76 = vector.broadcast %75 : f32 to vector<8x128xf32>
    %77 = arith.mulf %76, %9 : vector<8x128xf32>
    %78 = arith.addf %74, %77 : vector<8x128xf32>
    %c23 = arith.constant 23 : index
    %79 = memref.load %arg1[%c23] : memref<52xf32, #tpu.memory_space<smem>>
    %80 = vector.broadcast %79 : f32 to vector<8x128xf32>
    %81 = arith.addf %78, %80 : vector<8x128xf32>
    %cst_5 = arith.constant 0.000000e+00 : f32
    %82 = vector.broadcast %cst_5 : f32 to vector<8x128xf32>
    %83 = arith.maximumf %81, %82 : vector<8x128xf32>
    %c33 = arith.constant 33 : index
    %84 = memref.load %arg1[%c33] : memref<52xf32, #tpu.memory_space<smem>>
    %c43 = arith.constant 43 : index
    %85 = memref.load %arg1[%c43] : memref<52xf32, #tpu.memory_space<smem>>
    %86 = vector.broadcast %84 : f32 to vector<8x128xf32>
    %87 = vector.broadcast %85 : f32 to vector<8x128xf32>
    %88 = arith.select %5, %86, %87 : vector<8x128xi1>, vector<8x128xf32>
    %89 = arith.mulf %88, %83 : vector<8x128xf32>
    %90 = arith.addf %71, %89 : vector<8x128xf32>
    %c8 = arith.constant 8 : index
    %91 = memref.load %arg1[%c8] : memref<52xf32, #tpu.memory_space<smem>>
    %92 = vector.broadcast %91 : f32 to vector<8x128xf32>
    %93 = arith.mulf %92, %7 : vector<8x128xf32>
    %c9 = arith.constant 9 : index
    %94 = memref.load %arg1[%c9] : memref<52xf32, #tpu.memory_space<smem>>
    %95 = vector.broadcast %94 : f32 to vector<8x128xf32>
    %96 = arith.mulf %95, %9 : vector<8x128xf32>
    %97 = arith.addf %93, %96 : vector<8x128xf32>
    %c24 = arith.constant 24 : index
    %98 = memref.load %arg1[%c24] : memref<52xf32, #tpu.memory_space<smem>>
    %99 = vector.broadcast %98 : f32 to vector<8x128xf32>
    %100 = arith.addf %97, %99 : vector<8x128xf32>
    %cst_6 = arith.constant 0.000000e+00 : f32
    %101 = vector.broadcast %cst_6 : f32 to vector<8x128xf32>
    %102 = arith.maximumf %100, %101 : vector<8x128xf32>
    %c34 = arith.constant 34 : index
    %103 = memref.load %arg1[%c34] : memref<52xf32, #tpu.memory_space<smem>>
    %c44 = arith.constant 44 : index
    %104 = memref.load %arg1[%c44] : memref<52xf32, #tpu.memory_space<smem>>
    %105 = vector.broadcast %103 : f32 to vector<8x128xf32>
    %106 = vector.broadcast %104 : f32 to vector<8x128xf32>
    %107 = arith.select %5, %105, %106 : vector<8x128xi1>, vector<8x128xf32>
    %108 = arith.mulf %107, %102 : vector<8x128xf32>
    %109 = arith.addf %90, %108 : vector<8x128xf32>
    %c10 = arith.constant 10 : index
    %110 = memref.load %arg1[%c10] : memref<52xf32, #tpu.memory_space<smem>>
    %111 = vector.broadcast %110 : f32 to vector<8x128xf32>
    %112 = arith.mulf %111, %7 : vector<8x128xf32>
    %c11 = arith.constant 11 : index
    %113 = memref.load %arg1[%c11] : memref<52xf32, #tpu.memory_space<smem>>
    %114 = vector.broadcast %113 : f32 to vector<8x128xf32>
    %115 = arith.mulf %114, %9 : vector<8x128xf32>
    %116 = arith.addf %112, %115 : vector<8x128xf32>
    %c25 = arith.constant 25 : index
    %117 = memref.load %arg1[%c25] : memref<52xf32, #tpu.memory_space<smem>>
    %118 = vector.broadcast %117 : f32 to vector<8x128xf32>
    %119 = arith.addf %116, %118 : vector<8x128xf32>
    %cst_7 = arith.constant 0.000000e+00 : f32
    %120 = vector.broadcast %cst_7 : f32 to vector<8x128xf32>
    %121 = arith.maximumf %119, %120 : vector<8x128xf32>
    %c35 = arith.constant 35 : index
    %122 = memref.load %arg1[%c35] : memref<52xf32, #tpu.memory_space<smem>>
    %c45 = arith.constant 45 : index
    %123 = memref.load %arg1[%c45] : memref<52xf32, #tpu.memory_space<smem>>
    %124 = vector.broadcast %122 : f32 to vector<8x128xf32>
    %125 = vector.broadcast %123 : f32 to vector<8x128xf32>
    %126 = arith.select %5, %124, %125 : vector<8x128xi1>, vector<8x128xf32>
    %127 = arith.mulf %126, %121 : vector<8x128xf32>
    %128 = arith.addf %109, %127 : vector<8x128xf32>
    %c12 = arith.constant 12 : index
    %129 = memref.load %arg1[%c12] : memref<52xf32, #tpu.memory_space<smem>>
    %130 = vector.broadcast %129 : f32 to vector<8x128xf32>
    %131 = arith.mulf %130, %7 : vector<8x128xf32>
    %c13 = arith.constant 13 : index
    %132 = memref.load %arg1[%c13] : memref<52xf32, #tpu.memory_space<smem>>
    %133 = vector.broadcast %132 : f32 to vector<8x128xf32>
    %134 = arith.mulf %133, %9 : vector<8x128xf32>
    %135 = arith.addf %131, %134 : vector<8x128xf32>
    %c26 = arith.constant 26 : index
    %136 = memref.load %arg1[%c26] : memref<52xf32, #tpu.memory_space<smem>>
    %137 = vector.broadcast %136 : f32 to vector<8x128xf32>
    %138 = arith.addf %135, %137 : vector<8x128xf32>
    %cst_8 = arith.constant 0.000000e+00 : f32
    %139 = vector.broadcast %cst_8 : f32 to vector<8x128xf32>
    %140 = arith.maximumf %138, %139 : vector<8x128xf32>
    %c36 = arith.constant 36 : index
    %141 = memref.load %arg1[%c36] : memref<52xf32, #tpu.memory_space<smem>>
    %c46 = arith.constant 46 : index
    %142 = memref.load %arg1[%c46] : memref<52xf32, #tpu.memory_space<smem>>
    %143 = vector.broadcast %141 : f32 to vector<8x128xf32>
    %144 = vector.broadcast %142 : f32 to vector<8x128xf32>
    %145 = arith.select %5, %143, %144 : vector<8x128xi1>, vector<8x128xf32>
    %146 = arith.mulf %145, %140 : vector<8x128xf32>
    %147 = arith.addf %128, %146 : vector<8x128xf32>
    %c14 = arith.constant 14 : index
    %148 = memref.load %arg1[%c14] : memref<52xf32, #tpu.memory_space<smem>>
    %149 = vector.broadcast %148 : f32 to vector<8x128xf32>
    %150 = arith.mulf %149, %7 : vector<8x128xf32>
    %c15 = arith.constant 15 : index
    %151 = memref.load %arg1[%c15] : memref<52xf32, #tpu.memory_space<smem>>
    %152 = vector.broadcast %151 : f32 to vector<8x128xf32>
    %153 = arith.mulf %152, %9 : vector<8x128xf32>
    %154 = arith.addf %150, %153 : vector<8x128xf32>
    %c27 = arith.constant 27 : index
    %155 = memref.load %arg1[%c27] : memref<52xf32, #tpu.memory_space<smem>>
    %156 = vector.broadcast %155 : f32 to vector<8x128xf32>
    %157 = arith.addf %154, %156 : vector<8x128xf32>
    %cst_9 = arith.constant 0.000000e+00 : f32
    %158 = vector.broadcast %cst_9 : f32 to vector<8x128xf32>
    %159 = arith.maximumf %157, %158 : vector<8x128xf32>
    %c37 = arith.constant 37 : index
    %160 = memref.load %arg1[%c37] : memref<52xf32, #tpu.memory_space<smem>>
    %c47 = arith.constant 47 : index
    %161 = memref.load %arg1[%c47] : memref<52xf32, #tpu.memory_space<smem>>
    %162 = vector.broadcast %160 : f32 to vector<8x128xf32>
    %163 = vector.broadcast %161 : f32 to vector<8x128xf32>
    %164 = arith.select %5, %162, %163 : vector<8x128xi1>, vector<8x128xf32>
    %165 = arith.mulf %164, %159 : vector<8x128xf32>
    %166 = arith.addf %147, %165 : vector<8x128xf32>
    %c16 = arith.constant 16 : index
    %167 = memref.load %arg1[%c16] : memref<52xf32, #tpu.memory_space<smem>>
    %168 = vector.broadcast %167 : f32 to vector<8x128xf32>
    %169 = arith.mulf %168, %7 : vector<8x128xf32>
    %c17 = arith.constant 17 : index
    %170 = memref.load %arg1[%c17] : memref<52xf32, #tpu.memory_space<smem>>
    %171 = vector.broadcast %170 : f32 to vector<8x128xf32>
    %172 = arith.mulf %171, %9 : vector<8x128xf32>
    %173 = arith.addf %169, %172 : vector<8x128xf32>
    %c28 = arith.constant 28 : index
    %174 = memref.load %arg1[%c28] : memref<52xf32, #tpu.memory_space<smem>>
    %175 = vector.broadcast %174 : f32 to vector<8x128xf32>
    %176 = arith.addf %173, %175 : vector<8x128xf32>
    %cst_10 = arith.constant 0.000000e+00 : f32
    %177 = vector.broadcast %cst_10 : f32 to vector<8x128xf32>
    %178 = arith.maximumf %176, %177 : vector<8x128xf32>
    %c38 = arith.constant 38 : index
    %179 = memref.load %arg1[%c38] : memref<52xf32, #tpu.memory_space<smem>>
    %c48 = arith.constant 48 : index
    %180 = memref.load %arg1[%c48] : memref<52xf32, #tpu.memory_space<smem>>
    %181 = vector.broadcast %179 : f32 to vector<8x128xf32>
    %182 = vector.broadcast %180 : f32 to vector<8x128xf32>
    %183 = arith.select %5, %181, %182 : vector<8x128xi1>, vector<8x128xf32>
    %184 = arith.mulf %183, %178 : vector<8x128xf32>
    %185 = arith.addf %166, %184 : vector<8x128xf32>
    %c18 = arith.constant 18 : index
    %186 = memref.load %arg1[%c18] : memref<52xf32, #tpu.memory_space<smem>>
    %187 = vector.broadcast %186 : f32 to vector<8x128xf32>
    %188 = arith.mulf %187, %7 : vector<8x128xf32>
    %c19 = arith.constant 19 : index
    %189 = memref.load %arg1[%c19] : memref<52xf32, #tpu.memory_space<smem>>
    %190 = vector.broadcast %189 : f32 to vector<8x128xf32>
    %191 = arith.mulf %190, %9 : vector<8x128xf32>
    %192 = arith.addf %188, %191 : vector<8x128xf32>
    %c29 = arith.constant 29 : index
    %193 = memref.load %arg1[%c29] : memref<52xf32, #tpu.memory_space<smem>>
    %194 = vector.broadcast %193 : f32 to vector<8x128xf32>
    %195 = arith.addf %192, %194 : vector<8x128xf32>
    %cst_11 = arith.constant 0.000000e+00 : f32
    %196 = vector.broadcast %cst_11 : f32 to vector<8x128xf32>
    %197 = arith.maximumf %195, %196 : vector<8x128xf32>
    %c39 = arith.constant 39 : index
    %198 = memref.load %arg1[%c39] : memref<52xf32, #tpu.memory_space<smem>>
    %c49 = arith.constant 49 : index
    %199 = memref.load %arg1[%c49] : memref<52xf32, #tpu.memory_space<smem>>
    %200 = vector.broadcast %198 : f32 to vector<8x128xf32>
    %201 = vector.broadcast %199 : f32 to vector<8x128xf32>
    %202 = arith.select %5, %200, %201 : vector<8x128xi1>, vector<8x128xf32>
    %203 = arith.mulf %202, %197 : vector<8x128xf32>
    %204 = arith.addf %185, %203 : vector<8x128xf32>
    %c0_12 = arith.constant 0 : index
    %c0_13 = arith.constant 0 : index
    %205 = vector.load %arg3[%c0_12, %c0_13] : memref<8x128xf32, #tpu.memory_space<vmem>>, vector<8x128xf32>
    tpu.vector_store %arg3[%c0_12, %c0_13], %204 {strides = array<i32>} : memref<8x128xf32, #tpu.memory_space<vmem>>, vector<8x128xf32>,
    return
  }
  func.func @transform_0(%arg0: i32) -> i32 {
    %c0_i32 = arith.constant 0 : i32
    %c0_i32_0 = arith.constant 0 : i32
    return %c0_i32 : i32
  }
  func.func @transform_1(%arg0: i32) -> (i32, i32) {
    %c0_i32 = arith.constant 0 : i32
    %c0_i32_0 = arith.constant 0 : i32
    return %arg0, %c0_i32 : i32, i32
  }
  func.func @transform_2(%arg0: i32) -> (i32, i32) {
    %c0_i32 = arith.constant 0 : i32
    %c0_i32_0 = arith.constant 0 : i32
    return %arg0, %c0_i32 : i32, i32
  }
}

</mosaic_0001>

<llo_original>
// kernel: tpu_custom_call.1
$region0: #{tpu_custom_call.1}
  #allocation0 [shape = 'u32[]', space=smem, size = 0x4, offset = 0x4, fixed_abs, tag = 'smem constant byte address 0x4 - core index']
  #allocation1 [shape = 'u32[144,128]{1,0:T(1,128)}', space=vmem, size = 0x12000, scoped, tag = 'internal scratch']
  %s0 = inlined_call_operand.hbm [shape: f32[52], index: 0, kind: input, shape index: {}]
  %s1 = inlined_call_operand.hbm [shape: f32[8,128], index: 1, kind: input, shape index: {}]
  %s2 = inlined_call_operand.hbm [shape: f32[8,128], index: 2, kind: output, shape index: {}]
  %s3 = sld [smem:[#allocation0]]
  $region26: #{tpu_custom_call.1} parent=0
    _
  %s5 = ssub.s32 1, %s3
  %s6 = scalar_select 0, %s5, %s3
  $region1: #{tpu_custom_call.1} parent=0
    #allocation2 [shape = 'u8[512]{0}', space=smem, size = 0x200, scoped, tag = 'input window, operand 0, single buffered']
    #allocation3 [shape = 's32[1]{0}', space=sflag, size = 0x4, scoped, tag = 'scoped memory for tpu_custom_call.1']
    #allocation4 [shape = 's32[1]{0}', space=sflag, size = 0x4, scoped, tag = 'scoped memory for tpu_custom_call.1']
    #allocation5 [shape = 's32[1]{0}', space=sflag, size = 0x4, scoped, tag = 'scoped memory for tpu_custom_call.1']
    #allocation6 [shape = 'u8[4096]{0}', space=vmem, size = 0x1000, scoped, tag = 'input window, operand 1, single buffered']
    #allocation7 [shape = 'u8[4096]{0}', space=vmem, size = 0x1000, scoped, tag = 'output window, operand 0, single buffered']
    %7 = vsyncpa [#allocation5], 0
    %8 = vsyncpa [#allocation3], 0
    %9 = vsyncpa [#allocation4], 0
    // Predicated region
    $region2: #{tpu_custom_call.1} parent=1 // pred_check
      _
    $region3: #{tpu_custom_call.1} parent=1 // pred_check_branch
      %11 = sbr.rel (0) target = $region5
    $region4: #{tpu_custom_call.1} parent=1 // pred_region
      %s13 = ssub.s32 16, 16
      %14 = vsyncadd [#allocation5], %s13
      %17 = dma.hbm_to_smem %s0, 16, [#allocation2], [#allocation5]
    $region5: #{tpu_custom_call.1} parent=1 // pred_fallthru
      _
    // Predicated region
    $region6: #{tpu_custom_call.1} parent=1 // pred_check
      _
    $region7: #{tpu_custom_call.1} parent=1 // pred_check_branch
      %19 = sbr.rel (0) target = $region9
    $region8: #{tpu_custom_call.1} parent=1 // pred_region
      %s21 = ssub.s32 128, 128
      %22 = vsyncadd [#allocation3], %s21
      %s24 = sshll.u32 [#allocation6], 4
      %s25 = int_to_ptr.vmem [resolvable:$true] %s24
      %27 = dma.hbm_to_vmem [thread:$0]  %s1, 128, %s25, [#allocation3]
    $region9: #{tpu_custom_call.1} parent=1 // pred_fallthru
      _
    // Predicated region
    $region10: #{tpu_custom_call.1} parent=1 // pred_check
      _
    $region11: #{tpu_custom_call.1} parent=1 // pred_check_branch
      %29 = sbr.rel (0) target = $region13
    $region12: #{tpu_custom_call.1} parent=1 // pred_region
      %30 = dma.done [#allocation5], 16
    $region13: #{tpu_custom_call.1} parent=1 // pred_fallthru
      _
    // Predicated region
    $region14: #{tpu_custom_call.1} parent=1 // pred_check
      _
    $region15: #{tpu_custom_call.1} parent=1 // pred_check_branch
      %32 = sbr.rel (0) target = $region17
    $region16: #{tpu_custom_call.1} parent=1 // pred_region
      %33 = dma.done [#allocation3], 128
    $region17: #{tpu_custom_call.1} parent=1 // pred_fallthru
      _
    %34 = sfence
    %v35 = vld [vmem:[#allocation6] sm:$0xff]
    %v36 = vlaneseq
    %v37 = vand.u32 %v36, 127
    %v38 = vand.u32 %v37, 1
    %vm39 = vcmp.eq.s32.totalorder %v38, 0
    %40 = vrot.lane.b32.xlu0 %v35, 1
    %v41 = vpop.permute.xlu0 %40
    %v42 = vsel %vm39, %v35, %v41
    %43 = vrot.lane.b32.xlu0 %v35, 127
    %v44 = vpop.permute.xlu0 %43
    %v45 = vsel %vm39, %v44, %v35
    %s46 = sld [smem:[#allocation2 + $0x32]]
    %s47 = sld [smem:[#allocation2 + $0x33]]
    %v48 = vstv %s46
    %v49 = vstv %s47
    %v50 = vsel %vm39, %v48, %v49
    %s51 = sld [smem:[#allocation2]]
    %v52 = vstv %s51
    %v53 = vmul.f32 %v52, %v42
    %s54 = sld [smem:[#allocation2 + $0x1]]
    %v55 = vstv %s54
    %v56 = vmul.f32 %v55, %v45
    %v57 = vadd.f32 %v53, %v56
    %s58 = sld [smem:[#allocation2 + $0x14]]
    %v59 = vstv %s58
    %v60 = vadd.f32 %v57, %v59
    %v61 = vmax.f32 %v60, 0.0
    %s62 = sld [smem:[#allocation2 + $0x1e]]
    %s63 = sld [smem:[#allocation2 + $0x28]]
    %v64 = vstv %s62
    %v65 = vstv %s63
    %v66 = vsel %vm39, %v64, %v65
    %v67 = vmul.f32 %v66, %v61
    %v68 = vadd.f32 %v50, %v67
    %s69 = sld [smem:[#allocation2 + $0x2]]
    %v70 = vstv %s69
    %v71 = vmul.f32 %v70, %v42
    %s72 = sld [smem:[#allocation2 + $0x3]]
    %v73 = vstv %s72
    %v74 = vmul.f32 %v73, %v45
    %v75 = vadd.f32 %v71, %v74
    %s76 = sld [smem:[#allocation2 + $0x15]]
    %v77 = vstv %s76
    %v78 = vadd.f32 %v75, %v77
    %v79 = vmax.f32 %v78, 0.0
    %s80 = sld [smem:[#allocation2 + $0x1f]]
    %s81 = sld [smem:[#allocation2 + $0x29]]
    %v82 = vstv %s80
    %v83 = vstv %s81
    %v84 = vsel %vm39, %v82, %v83
    %v85 = vmul.f32 %v84, %v79
    %v86 = vadd.f32 %v68, %v85
    %s87 = sld [smem:[#allocation2 + $0x4]]
    %v88 = vstv %s87
    %v89 = vmul.f32 %v88, %v42
    %s90 = sld [smem:[#allocation2 + $0x5]]
    %v91 = vstv %s90
    %v92 = vmul.f32 %v91, %v45
    %v93 = vadd.f32 %v89, %v92
    %s94 = sld [smem:[#allocation2 + $0x16]]
    %v95 = vstv %s94
    %v96 = vadd.f32 %v93, %v95
    %v97 = vmax.f32 %v96, 0.0
    %s98 = sld [smem:[#allocation2 + $0x20]]
    %s99 = sld [smem:[#allocation2 + $0x2a]]
    %v100 = vstv %s98
    %v101 = vstv %s99
    %v102 = vsel %vm39, %v100, %v101
    %v103 = vmul.f32 %v102, %v97
    %v104 = vadd.f32 %v86, %v103
    %s105 = sld [smem:[#allocation2 + $0x6]]
    %v106 = vstv %s105
    %v107 = vmul.f32 %v106, %v42
    %s108 = sld [smem:[#allocation2 + $0x7]]
    %v109 = vstv %s108
    %v110 = vmul.f32 %v109, %v45
    %v111 = vadd.f32 %v107, %v110
    %s112 = sld [smem:[#allocation2 + $0x17]]
    %v113 = vstv %s112
    %v114 = vadd.f32 %v111, %v113
    %v115 = vmax.f32 %v114, 0.0
    %s116 = sld [smem:[#allocation2 + $0x21]]
    %s117 = sld [smem:[#allocation2 + $0x2b]]
    %v118 = vstv %s116
    %v119 = vstv %s117
    %v120 = vsel %vm39, %v118, %v119
    %v121 = vmul.f32 %v120, %v115
    %v122 = vadd.f32 %v104, %v121
    %s123 = sld [smem:[#allocation2 + $0x8]]
    %v124 = vstv %s123
    %v125 = vmul.f32 %v124, %v42
    %s126 = sld [smem:[#allocation2 + $0x9]]
    %v127 = vstv %s126
    %v128 = vmul.f32 %v127, %v45
    %v129 = vadd.f32 %v125, %v128
    %s130 = sld [smem:[#allocation2 + $0x18]]
    %v131 = vstv %s130
    %v132 = vadd.f32 %v129, %v131
    %v133 = vmax.f32 %v132, 0.0
    %s134 = sld [smem:[#allocation2 + $0x22]]
    %s135 = sld [smem:[#allocation2 + $0x2c]]
    %v136 = vstv %s134
    %v137 = vstv %s135
    %v138 = vsel %vm39, %v136, %v137
    %v139 = vmul.f32 %v138, %v133
    %v140 = vadd.f32 %v122, %v139
    %s141 = sld [smem:[#allocation2 + $0xa]]
    %v142 = vstv %s141
    %v143 = vmul.f32 %v142, %v42
    %s144 = sld [smem:[#allocation2 + $0xb]]
    %v145 = vstv %s144
    %v146 = vmul.f32 %v145, %v45
    %v147 = vadd.f32 %v143, %v146
    %s148 = sld [smem:[#allocation2 + $0x19]]
    %v149 = vstv %s148
    %v150 = vadd.f32 %v147, %v149
    %v151 = vmax.f32 %v150, 0.0
    %s152 = sld [smem:[#allocation2 + $0x23]]
    %s153 = sld [smem:[#allocation2 + $0x2d]]
    %v154 = vstv %s152
    %v155 = vstv %s153
    %v156 = vsel %vm39, %v154, %v155
    %v157 = vmul.f32 %v156, %v151
    %v158 = vadd.f32 %v140, %v157
    %s159 = sld [smem:[#allocation2 + $0xc]]
    %v160 = vstv %s159
    %v161 = vmul.f32 %v160, %v42
    %s162 = sld [smem:[#allocation2 + $0xd]]
    %v163 = vstv %s162
    %v164 = vmul.f32 %v163, %v45
    %v165 = vadd.f32 %v161, %v164
    %s166 = sld [smem:[#allocation2 + $0x1a]]
    %v167 = vstv %s166
    %v168 = vadd.f32 %v165, %v167
    %v169 = vmax.f32 %v168, 0.0
    %s170 = sld [smem:[#allocation2 + $0x24]]
    %s171 = sld [smem:[#allocation2 + $0x2e]]
    %v172 = vstv %s170
    %v173 = vstv %s171
    %v174 = vsel %vm39, %v172, %v173
    %v175 = vmul.f32 %v174, %v169
    %v176 = vadd.f32 %v158, %v175
    %s177 = sld [smem:[#allocation2 + $0xe]]
    %v178 = vstv %s177
    %v179 = vmul.f32 %v178, %v42
    %s180 = sld [smem:[#allocation2 + $0xf]]
    %v181 = vstv %s180
    %v182 = vmul.f32 %v181, %v45
    %v183 = vadd.f32 %v179, %v182
    %s184 = sld [smem:[#allocation2 + $0x1b]]
    %v185 = vstv %s184
    %v186 = vadd.f32 %v183, %v185
    %v187 = vmax.f32 %v186, 0.0
    %s188 = sld [smem:[#allocation2 + $0x25]]
    %s189 = sld [smem:[#allocation2 + $0x2f]]
    %v190 = vstv %s188
    %v191 = vstv %s189
    %v192 = vsel %vm39, %v190, %v191
    %v193 = vmul.f32 %v192, %v187
    %v194 = vadd.f32 %v176, %v193
    %s195 = sld [smem:[#allocation2 + $0x10]]
    %v196 = vstv %s195
    %v197 = vmul.f32 %v196, %v42
    %s198 = sld [smem:[#allocation2 + $0x11]]
    %v199 = vstv %s198
    %v200 = vmul.f32 %v199, %v45
    %v201 = vadd.f32 %v197, %v200
    %s202 = sld [smem:[#allocation2 + $0x1c]]
    %v203 = vstv %s202
    %v204 = vadd.f32 %v201, %v203
    %v205 = vmax.f32 %v204, 0.0
    %s206 = sld [smem:[#allocation2 + $0x26]]
    %s207 = sld [smem:[#allocation2 + $0x30]]
    %v208 = vstv %s206
    %v209 = vstv %s207
    %v210 = vsel %vm39, %v208, %v209
    %v211 = vmul.f32 %v210, %v205
    %v212 = vadd.f32 %v194, %v211
    %s213 = sld [smem:[#allocation2 + $0x12]]
    %v214 = vstv %s213
    %v215 = vmul.f32 %v214, %v42
    %s216 = sld [smem:[#allocation2 + $0x13]]
    %v217 = vstv %s216
    %v218 = vmul.f32 %v217, %v45
    %v219 = vadd.f32 %v215, %v218
    %s220 = sld [smem:[#allocation2 + $0x1d]]
    %v221 = vstv %s220
    %v222 = vadd.f32 %v219, %v221
    %v223 = vmax.f32 %v222, 0.0
    %s224 = sld [smem:[#allocation2 + $0x27]]
    %s225 = sld [smem:[#allocation2 + $0x31]]
    %v226 = vstv %s224
    %v227 = vstv %s225
    %v228 = vsel %vm39, %v226, %v227
    %v229 = vmul.f32 %v228, %v223
    %v230 = vadd.f32 %v212, %v229
    %231 = vst [vmem:[#allocation7] sm:$0xff] %v230
    // Predicated region
    $region18: #{tpu_custom_call.1} parent=1 // pred_check
      _
    $region19: #{tpu_custom_call.1} parent=1 // pred_check_branch
      %233 = sbr.rel (0) target = $region21
    $region20: #{tpu_custom_call.1} parent=1 // pred_region
      %s235 = ssub.s32 128, 128
      %236 = vsyncadd [#allocation4], %s235
      %s238 = sshll.u32 [#allocation7], 4
      %s239 = int_to_ptr.vmem [resolvable:$true] %s238
      %241 = dma.vmem_to_hbm [thread:$0]  %s239, 128, %s2, [#allocation4]
    $region21: #{tpu_custom_call.1} parent=1 // pred_fallthru
      _
    // Predicated region
    $region22: #{tpu_custom_call.1} parent=1 // pred_check
      _
    $region23: #{tpu_custom_call.1} parent=1 // pred_check_branch
      %243 = sbr.rel (0) target = $region25
    $region24: #{tpu_custom_call.1} parent=1 // pred_region
      %244 = dma.done [#allocation4], 128
    $region25: #{tpu_custom_call.1} parent=1 // pred_fallthru
      _
    %245 = vsyncpa [#allocation3], 1
    %246 = vsyncpa [#allocation4], 1
    %247 = vsyncpa [#allocation5], 1

</llo_original>
